<compile_context>
chip_gen: v7x
topology: tpu7x:2x2x1
jax: 0.10.0
libtpu: 0.0.40
codegen_flags: <defaults>
</compile_context>

<pallas_src>
import jax
import jax.numpy as jnp
from jax import lax
from jax.experimental import pallas as pl
from jax.experimental.pallas import tpu as pltpu
import numpy as np

H = W = 16          # spatial size of the example
CIN = 3             # input channels
COUT = 30           # 17 + 13 output channels
K = 5               # fused kernel size (3x3 embedded into 5x5)
PAD = 2
KKC = K * K * CIN   # 75 = contraction depth of the im2col matmul
KKC1 = KKC + 1      # 76 = +1 ones row carrying the fused bias
HW = H * W          # 256
T_TLU = 8.0 / 255.0
BN_EPS = 1e-5


def srm_kernel(x_ref, w_ref, p_ref, o_ref):
    """One fused MXU matmul + per-channel clamp epilogue.

    x_ref : (KKC1, N*HW)  bf16  im2col patches (+ ones row) for ALL batch elems
    w_ref : (COUT, KKC1)  bf16  BN-scaled conv weights (+ fused bias column)
    p_ref : (COUT, 2)     f32   per-channel clamp bounds [lo | hi]
    o_ref : (COUT, N*HW)  f32   channels-major output
    """
    # Single MXU matmul: (30, 76) x (76, 512) -> (30, 512), f32 accumulation.
    acc = jnp.dot(w_ref[...], x_ref[...],
                  preferred_element_type=jnp.float32)
    # Fused TLU + eval-mode BatchNorm: one per-channel clamp (2 VPU ops).
    y = jnp.minimum(jnp.maximum(acc, p_ref[:, 0:1]), p_ref[:, 1:2])
    o_ref[...] = y.astype(o_ref.dtype)


def _prep_params(w3, b3, w5, b5, gamma, beta, run_mean, run_var):
    """Fold bias + BatchNorm into one weight tile and per-channel clamp bounds."""
    # Embed 3x3 weights into 5x5 and concatenate -> (30, 3, 5, 5) OIHW.
    w3_emb = jnp.pad(w3, ((0, 0), (0, 0), (1, 1), (1, 1)))
    w_full = jnp.concatenate([w3_emb, w5], axis=0)
    bias = jnp.concatenate([b3, b5], axis=0)

    inv = gamma / jnp.sqrt(run_var + BN_EPS)      # BN scale
    shift = beta - run_mean * inv                 # BN shift

    # Fold BN scale into the conv weights; flatten OIHW -> (30, 75) with
    # index = cin*25 + ky*5 + kx (matches conv_general_dilated_patches order).
    w2d = (w_full * inv[:, None, None, None]).reshape(COUT, KKC)
    # Fused bias column (contracted against the ones row of x_col):
    #   acc = inv*(conv + bias) + shift
    bias_col = bias * inv + shift
    w2d = jnp.concatenate([w2d, bias_col[:, None]], axis=1)   # (30, 76)

    # Per-channel clamp bounds; min/max ordering handles negative gamma (inv<0).
    lo = jnp.minimum(-T_TLU * inv, T_TLU * inv) + shift
    hi = jnp.maximum(-T_TLU * inv, T_TLU * inv) + shift
    params = jnp.stack([lo, hi], axis=1).astype(jnp.float32)  # (30, 2)
    return w2d.astype(jnp.bfloat16), params


def _prep_input(x_nchw):
    """im2col as a single fused HLO, batch folded into the lane dimension."""
    n = x_nchw.shape[0]
    # (N, CIN*K*K, H, W); output channel order = cin*25 + ky*5 + kx.
    patches = lax.conv_general_dilated_patches(
        x_nchw, filter_shape=(K, K), window_strides=(1, 1),
        padding=((PAD, PAD), (PAD, PAD)),
        dimension_numbers=("NCHW", "OIHW", "NCHW"))
    x_col = jnp.transpose(patches, (1, 0, 2, 3)).reshape(KKC, n * HW)
    ones = jnp.ones((1, n * HW), dtype=x_col.dtype)
    return jnp.concatenate([x_col, ones], axis=0).astype(jnp.bfloat16)  # (76, N*HW)


def srm_forward(x_nchw, w3, b3, w5, b5, gamma, beta, run_mean, run_var,
                out_dtype=jnp.float32):
    """Wrapper: NCHW in / NCHW out, matching the PyTorch module.

    out_dtype can be set to jnp.bfloat16 if the consumer accepts it (halves
    the output writeback); default f32 matches the PyTorch module.
    """
    n = x_nchw.shape[0]
    nhw = n * HW
    w2d, params = _prep_params(w3, b3, w5, b5, gamma, beta, run_mean, run_var)
    x_col = _prep_input(x_nchw)

    out2d = pl.pallas_call(
        srm_kernel,
        out_shape=jax.ShapeDtypeStruct((COUT, nhw), out_dtype),
        grid=(1,),
        in_specs=[
            pl.BlockSpec((KKC1, nhw), lambda i: (0, 0)),
            pl.BlockSpec((COUT, KKC1), lambda i: (0, 0)),
            pl.BlockSpec((COUT, 2), lambda i: (0, 0)),
        ],
        out_specs=pl.BlockSpec((COUT, nhw), lambda i: (0, 0)),
        compiler_params=pltpu.CompilerParams(
            dimension_semantics=("arbitrary",)),
    )(x_col, w2d, params)

    # (COUT, N*HW) -> (N, COUT, H, W): one small transpose (layout plumbing).
    return jnp.transpose(out2d.reshape(COUT, n, H, W), (1, 0, 2, 3))


def ref_forward(x, w3, b3, w5, b5, gamma, beta, run_mean, run_var):
    """Pure-JAX reference (lax.conv, full f32 precision) for correctness."""
    dn = lax.conv_dimension_numbers(x.shape, w3.shape, ("NCHW", "OIHW", "NCHW"))
    c3 = lax.conv_general_dilated(x, w3, (1, 1), [(1, 1), (1, 1)],
                                  dimension_numbers=dn,
                                  precision=lax.Precision.HIGHEST)
    c3 = c3 + b3[None, :, None, None]
    dn5 = lax.conv_dimension_numbers(x.shape, w5.shape, ("NCHW", "OIHW", "NCHW"))
    c5 = lax.conv_general_dilated(x, w5, (1, 1), [(2, 2), (2, 2)],
                                  dimension_numbers=dn5,
                                  precision=lax.Precision.HIGHEST)
    c5 = c5 + b5[None, :, None, None]
    c = jnp.concatenate([c3, c5], axis=1)
    c = jnp.clip(c, -T_TLU, T_TLU)
    inv = gamma / jnp.sqrt(run_var + BN_EPS)
    c = (c - run_mean[None, :, None, None]) * inv[None, :, None, None] \
        + beta[None, :, None, None]
    return c


if __name__ == "__main__":
    key = jax.random.PRNGKey(0)
    kx, k1, k2, k3, k4, k5, k6, k7, k8 = jax.random.split(key, 9)

    # Deterministic example input (NCHW, like the PyTorch module).
    x = jax.random.normal(kx, (2, CIN, H, W), dtype=jnp.float32)

    # Deterministic synthetic parameters (shapes from the module's __init__).
    w3 = 0.1 * jax.random.normal(k1, (17, CIN, 3, 3), dtype=jnp.float32)
    b3 = 0.01 * jax.random.normal(k2, (17,), dtype=jnp.float32)
    w5 = 0.1 * jax.random.normal(k3, (13, CIN, 5, 5), dtype=jnp.float32)
    b5 = 0.01 * jax.random.normal(k4, (13,), dtype=jnp.float32)
    gamma = 1.0 + 0.1 * jax.random.normal(k5, (COUT,), dtype=jnp.float32)
    beta = 0.1 * jax.random.normal(k6, (COUT,), dtype=jnp.float32)
    run_mean = 0.01 * jax.random.normal(k7, (COUT,), dtype=jnp.float32)
    run_var = 1.0 + 0.1 * jax.nn.sigmoid(
        jax.random.normal(k8, (COUT,))).astype(jnp.float32)

    out = jax.block_until_ready(
        srm_forward(x, w3, b3, w5, b5, gamma, beta, run_mean, run_var))

    # --- Tight check: pure-JAX emulation of the EXACT fused kernel math ------
    # (same bf16 inputs, same fused weights/bounds) -> verifies layouts,
    # matmul and the clamp epilogue down to f32 accumulation noise.
    n = x.shape[0]
    w2d, params = _prep_params(w3, b3, w5, b5, gamma, beta, run_mean, run_var)
    x_col = _prep_input(x)
    acc = jnp.dot(w2d.astype(jnp.float32), x_col.astype(jnp.float32),
                  precision=lax.Precision.HIGHEST)
    emu = jnp.clip(acc, params[:, 0:1], params[:, 1:2])
    emu = jnp.transpose(emu.reshape(COUT, n, H, W), (1, 0, 2, 3))
    np.testing.assert_allclose(np.asarray(out), np.asarray(emu),
                               rtol=1e-4, atol=1e-5)

    # --- Loose check vs full-f32 reference: bounds bf16 quantization error ---
    # (values are clamped to +/- 8/255, so the deviation stays small).
    ref = ref_forward(x, w3, b3, w5, b5, gamma, beta, run_mean, run_var)
    np.testing.assert_allclose(np.asarray(out), np.asarray(ref),
                               rtol=2e-2, atol=2e-2)

    print("KERNEL_OK")
</pallas_src>

<mosaic_0001>
module attributes {stable_mosaic.version = 11 : i64} {
  func.func @srm_kernel(%arg0: i32, %arg1: memref<76x512xbf16, #tpu.memory_space<vmem>>, %arg2: memref<30x76xbf16, #tpu.memory_space<vmem>>, %arg3: memref<30x2xf32, #tpu.memory_space<vmem>>, %arg4: memref<30x512xf32, #tpu.memory_space<vmem>>) attributes {dimension_semantics = [#tpu.dimension_semantics<arbitrary>], iteration_bounds = array<i64: 1>, scalar_prefetch = 0 : i64, scratch_operands = 0 : i64, tpu.core_type = #tpu.core_type<tc>, window_params = [{pipeline_mode = #tpu.pipeline_mode<synchronous>, transform_indices = @transform_0, window_bounds = array<i64: 76, 512>}, {pipeline_mode = #tpu.pipeline_mode<synchronous>, transform_indices = @transform_1, window_bounds = array<i64: 30, 76>}, {pipeline_mode = #tpu.pipeline_mode<synchronous>, transform_indices = @transform_2, window_bounds = array<i64: 30, 2>}, {pipeline_mode = #tpu.pipeline_mode<synchronous>, transform_indices = @transform_3, window_bounds = array<i64: 30, 512>}]} {
    %c0 = arith.constant 0 : index
    %c0_0 = arith.constant 0 : index
    %0 = vector.load %arg2[%c0, %c0_0] : memref<30x76xbf16, #tpu.memory_space<vmem>>, vector<30x76xbf16>
    %c0_1 = arith.constant 0 : index
    %c0_2 = arith.constant 0 : index
    %1 = vector.load %arg1[%c0_1, %c0_2] : memref<76x512xbf16, #tpu.memory_space<vmem>>, vector<76x512xbf16>
    %cst = arith.constant dense<0.000000e+00> : vector<30x512xf32>
    %2 = tpu.matmul %0, %1, %cst {dimension_numbers = #tpu.dot_dimension_numbers<[1], [0], [0], [1], [0, 0, 1, 1], [], []>} : vector<30x76xbf16>, vector<76x512xbf16>, vector<30x512xf32> -> vector<30x512xf32>
    %c0_3 = arith.constant 0 : index
    %c0_4 = arith.constant 0 : index
    %3 = vector.load %arg3[%c0_3, %c0_4] : memref<30x2xf32, #tpu.memory_space<vmem>>, vector<30x1xf32>
    %4 = vector.broadcast %3 : vector<30x1xf32> to vector<30x512xf32>
    %5 = arith.maximumf %2, %4 : vector<30x512xf32>
    %c0_5 = arith.constant 0 : index
    %c1 = arith.constant 1 : index
    %6 = vector.load %arg3[%c0_5, %c1] : memref<30x2xf32, #tpu.memory_space<vmem>>, vector<30x1xf32>
    %7 = vector.broadcast %6 : vector<30x1xf32> to vector<30x512xf32>
    %8 = arith.minimumf %5, %7 : vector<30x512xf32>
    %c0_6 = arith.constant 0 : index
    %c0_7 = arith.constant 0 : index
    %9 = vector.load %arg4[%c0_6, %c0_7] : memref<30x512xf32, #tpu.memory_space<vmem>>, vector<30x512xf32>
    tpu.vector_store %arg4[%c0_6, %c0_7], %8 {strides = array<i32>} : memref<30x512xf32, #tpu.memory_space<vmem>>, vector<30x512xf32>,
    return
  }
  func.func @transform_0(%arg0: i32) -> (i32, i32) {
    %c0_i32 = arith.constant 0 : i32
    %c0_i32_0 = arith.constant 0 : i32
    %c0_i32_1 = arith.constant 0 : i32
    return %c0_i32, %c0_i32_0 : i32, i32
  }
  func.func @transform_1(%arg0: i32) -> (i32, i32) {
    %c0_i32 = arith.constant 0 : i32
    %c0_i32_0 = arith.constant 0 : i32
    %c0_i32_1 = arith.constant 0 : i32
    return %c0_i32, %c0_i32_0 : i32, i32
  }
  func.func @transform_2(%arg0: i32) -> (i32, i32) {
    %c0_i32 = arith.constant 0 : i32
    %c0_i32_0 = arith.constant 0 : i32
    %c0_i32_1 = arith.constant 0 : i32
    return %c0_i32, %c0_i32_0 : i32, i32
  }
  func.func @transform_3(%arg0: i32) -> (i32, i32) {
    %c0_i32 = arith.constant 0 : i32
    %c0_i32_0 = arith.constant 0 : i32
    %c0_i32_1 = arith.constant 0 : i32
    return %c0_i32, %c0_i32_0 : i32, i32
  }
}

</mosaic_0001>

<llo_original>
// kernel: tpu_custom_call.1
$region0: #{tpu_custom_call.1}
  #allocation0 [shape = 'u32[]', space=smem, size = 0x4, offset = 0x4, fixed_abs, tag = 'smem constant byte address 0x4 - core index']
  #allocation1 [shape = 'u32[144,128]{1,0:T(1,128)}', space=vmem, size = 0x12000, scoped, tag = 'internal scratch']
  %s0 = inlined_call_operand.hbm [shape: bf16[76,512], index: 0, kind: input, shape index: {}]
  %s1 = inlined_call_operand.vmem [shape: bf16[30,76], index: 1, kind: input, shape index: {}]
  %s2 = inlined_call_operand.vmem [shape: f32[30,2], index: 2, kind: input, shape index: {}]
  %s3 = inlined_call_operand.hbm [shape: f32[30,512], index: 3, kind: output, shape index: {}]
  %s4 = sld [smem:[#allocation0]]
  $region26: #{tpu_custom_call.1} parent=0
    _
  %s6 = ssub.s32 1, %s4
  %s7 = scalar_select 0, %s6, %s4
  $region1: #{tpu_custom_call.1} parent=0
    #allocation2 [shape = 'u8[81920]{0}', space=vmem, size = 0x14000, scoped, tag = 'input window, operand 0, single buffered']
    #allocation3 [shape = 's32[1]{0}', space=sflag, size = 0x4, scoped, tag = 'scoped memory for tpu_custom_call.1']
    #allocation4 [shape = 's32[1]{0}', space=sflag, size = 0x4, scoped, tag = 'scoped memory for tpu_custom_call.1']
    #allocation5 [shape = 'u8[65536]{0}', space=vmem, size = 0x10000, scoped, tag = 'output window, operand 0, single buffered']
    %8 = vsyncpa [#allocation3], 0
    %9 = vsyncpa [#allocation4], 0
    // Predicated region
    $region2: #{tpu_custom_call.1} parent=1 // pred_check
      _
    $region3: #{tpu_custom_call.1} parent=1 // pred_check_branch
      %11 = sbr.rel (0) target = $region5
    $region4: #{tpu_custom_call.1} parent=1 // pred_region
      %s13 = ssub.s32 2560, 2560
      %14 = vsyncadd [#allocation3], %s13
      %s15 = sshll.u32 [#allocation2], 4
      %s16 = int_to_ptr.vmem [resolvable:$true] %s15
      %21 = dma.hbm_to_vmem [thread:$0]  %s0, 2560, %s16, [#allocation3], 256, 256, 16
    $region5: #{tpu_custom_call.1} parent=1 // pred_fallthru
      _
    // Predicated region
    $region6: #{tpu_custom_call.1} parent=1 // pred_check
      _
    $region7: #{tpu_custom_call.1} parent=1 // pred_check_branch
      %23 = sbr.rel (0) target = $region9
    $region8: #{tpu_custom_call.1} parent=1 // pred_region
      _
    $region9: #{tpu_custom_call.1} parent=1 // pred_fallthru
      _
    // Predicated region
    $region10: #{tpu_custom_call.1} parent=1 // pred_check
      _
    $region11: #{tpu_custom_call.1} parent=1 // pred_check_branch
      %25 = sbr.rel (0) target = $region13
    $region12: #{tpu_custom_call.1} parent=1 // pred_region
      _
    $region13: #{tpu_custom_call.1} parent=1 // pred_fallthru
      _
    // Predicated region
    $region14: #{tpu_custom_call.1} parent=1 // pred_check
      _
    $region15: #{tpu_custom_call.1} parent=1 // pred_check_branch
      %27 = sbr.rel (0) target = $region17
    $region16: #{tpu_custom_call.1} parent=1 // pred_region
      %28 = dma.done [#allocation3], 2560
    $region17: #{tpu_custom_call.1} parent=1 // pred_fallthru
      _
    %v30 = vld [vmem:[%s1] sm:$0xf]
    %v31 = vld [vmem:[%s1 + $0x4] sm:$0xf]
    %v32 = vld [vmem:[%s1 + $0x8] sm:$0xf]
    %v33 = vld [vmem:[%s1 + $0xc] sm:$0x7]
    %v34 = vld [vmem:[#allocation2] sm:$0xff]
    %v35 = vld [vmem:[#allocation2 + $0x8] sm:$0xff]
    %v36 = vld [vmem:[#allocation2 + $0x10] sm:$0xff]
    %v37 = vld [vmem:[#allocation2 + $0x18] sm:$0xff]
    %v38 = vld [vmem:[#allocation2 + $0x20] sm:$0xff]
    %v39 = vld [vmem:[#allocation2 + $0x28] sm:$0xff]
    %v40 = vld [vmem:[#allocation2 + $0x30] sm:$0xff]
    %v41 = vld [vmem:[#allocation2 + $0x38] sm:$0xff]
    %v42 = vld [vmem:[#allocation2 + $0x40] sm:$0xff]
    %v43 = vld [vmem:[#allocation2 + $0x48] sm:$0xff]
    %v44 = vld [vmem:[#allocation2 + $0x50] sm:$0xff]
    %v45 = vld [vmem:[#allocation2 + $0x58] sm:$0xff]
    %v46 = vld [vmem:[#allocation2 + $0x60] sm:$0xff]
    %v47 = vld [vmem:[#allocation2 + $0x68] sm:$0xff]
    %v48 = vld [vmem:[#allocation2 + $0x70] sm:$0xff]
    %v49 = vld [vmem:[#allocation2 + $0x78] sm:$0xff]
    %v50 = vld [vmem:[#allocation2 + $0x80] sm:$0xff]
    %v51 = vld [vmem:[#allocation2 + $0x88] sm:$0xff]
    %v52 = vld [vmem:[#allocation2 + $0x90] sm:$0x33]
    %v53 = vld [vmem:[#allocation2 + $0x98] sm:$0x33]
    %v58 = vunpack.c.l.b16 %v30
    %v59 = vunpack.c.l.b16 %v31
    %v60 = vunpack.c.l.b16 %v32
    %v61 = vunpack.c.l.b16 %v33
    %v62 = vpack.c.b16 %v59, %v58
    %v63 = vpack.c.b16 %v61, %v60
    %v84 = vunpack.c.l.b16 %v34
    %v85 = vunpack.c.h.b16 %v34
    %v86 = vunpack.c.l.b16 %v35
    %v87 = vunpack.c.h.b16 %v35
    %v88 = vunpack.c.l.b16 %v36
    %v89 = vunpack.c.h.b16 %v36
    %v90 = vunpack.c.l.b16 %v37
    %v91 = vunpack.c.h.b16 %v37
    %v92 = vunpack.c.l.b16 %v38
    %v93 = vunpack.c.h.b16 %v38
    %v94 = vunpack.c.l.b16 %v39
    %v95 = vunpack.c.h.b16 %v39
    %v96 = vunpack.c.l.b16 %v40
    %v97 = vunpack.c.h.b16 %v40
    %v98 = vunpack.c.l.b16 %v41
    %v99 = vunpack.c.h.b16 %v41
    %v100 = vunpack.c.l.b16 %v42
    %v101 = vunpack.c.h.b16 %v42
    %v102 = vunpack.c.l.b16 %v43
    %v103 = vunpack.c.h.b16 %v43
    %v104 = vunpack.c.l.b16 %v44
    %v105 = vunpack.c.h.b16 %v44
    %v106 = vunpack.c.l.b16 %v45
    %v107 = vunpack.c.h.b16 %v45
    %v108 = vunpack.c.l.b16 %v46
    %v109 = vunpack.c.h.b16 %v46
    %v110 = vunpack.c.l.b16 %v47
    %v111 = vunpack.c.h.b16 %v47
    %v112 = vunpack.c.l.b16 %v48
    %v113 = vunpack.c.h.b16 %v48
    %v114 = vunpack.c.l.b16 %v49
    %v115 = vunpack.c.h.b16 %v49
    %v116 = vunpack.c.l.b16 %v50
    %v117 = vunpack.c.h.b16 %v50
    %v118 = vunpack.c.l.b16 %v51
    %v119 = vunpack.c.h.b16 %v51
    %v120 = vunpack.c.l.b16 %v52
    %v121 = vunpack.c.h.b16 %v52
    %v122 = vunpack.c.l.b16 %v53
    %v123 = vunpack.c.h.b16 %v53
    %v124 = vpack.c.b16 %v88, %v84
    %v125 = vpack.c.b16 %v89, %v85
    %v126 = vpack.c.b16 %v90, %v86
    %v127 = vpack.c.b16 %v91, %v87
    %v128 = vpack.c.b16 %v96, %v92
    %v129 = vpack.c.b16 %v97, %v93
    %v130 = vpack.c.b16 %v98, %v94
    %v131 = vpack.c.b16 %v99, %v95
    %v132 = vpack.c.b16 %v104, %v100
    %v133 = vpack.c.b16 %v105, %v101
    %v134 = vpack.c.b16 %v106, %v102
    %v135 = vpack.c.b16 %v107, %v103
    %v136 = vpack.c.b16 %v112, %v108
    %v137 = vpack.c.b16 %v113, %v109
    %v138 = vpack.c.b16 %v114, %v110
    %v139 = vpack.c.b16 %v115, %v111
    %v140 = vpack.c.b16 %v120, %v116
    %v141 = vpack.c.b16 %v121, %v117
    %v142 = vpack.c.b16 %v122, %v118
    %v143 = vpack.c.b16 %v123, %v119
    %vm160 = vcmask 621568
    %v162 = vsel %vm160, %v62, 0
    %v165 = vsel %vm160, %v63, 0
    %vm167 = vcmask 1045504
    %v169 = vsel %vm167, %v140, 0
    %v172 = vsel %vm167, %v141, 0
    %v175 = vsel %vm167, %v142, 0
    %v178 = vsel %vm167, %v143, 0
    %180 = vmatprep.subr.bf16.mxu0 %v125
    %181 = vmatpush1.bf16.msra.mxu0 %v124
    %182 = vmatprep.subr.bf16.mxu0 %v129
    %183 = vmatpush1.bf16.msra.mxu0 %v128
    %184 = vmatprep.subr.bf16.mxu0 %v133
    %185 = vmatpush1.bf16.msra.mxu0 %v132
    %186 = vmatprep.subr.bf16.mxu0 %v137
    %187 = vmatpush1.bf16.msra.mxu0 %v136
    %188 = vmatprep.subr.bf16.mxu0 %v172
    %189 = vmatpush1.bf16.msra.mxu0 %v169
    %190 = vmatprep.subr.bf16.mxu0 0
    %191 = vmatpush1.bf16.msra.mxu0 0
    %192 = vmatprep.subr.bf16.mxu0 0
    %193 = vmatpush1.bf16.msra.mxu0 0
    %194 = vmatprep.subr.bf16.mxu0 0
    %195 = vmatpush1.bf16.msra.mxu0 0
    %196 = vmatprep.subr.bf16.mxu0 0
    %197 = vmatpush1.bf16.msra.mxu0 0
    %198 = vmatprep.subr.bf16.mxu0 0
    %199 = vmatpush1.bf16.msra.mxu0 0
    %200 = vmatprep.subr.bf16.mxu0 0
    %201 = vmatpush1.bf16.msra.mxu0 0
    %202 = vmatprep.subr.bf16.mxu0 0
    %203 = vmatpush1.bf16.msra.mxu0 0
    %204 = vmatprep.subr.bf16.mxu0 0
    %205 = vmatpush1.bf16.msra.mxu0 0
    %206 = vmatprep.subr.bf16.mxu0 0
    %207 = vmatpush1.bf16.msra.mxu0 0
    %208 = vmatprep.subr.bf16.mxu0 0
    %209 = vmatpush1.bf16.msra.mxu0 0
    %210 = vmatprep.subr.bf16.mxu0 0
    %211 = vmatpush1.bf16.msra.mxu0 0
    %212 = vmatprep.mubr.bf16.mxu0 0
    %213 = vmatmul.mubr.bf16.gmra.mrb[0].mxu0 %v162
    %v214 = vpop.f32.mrb[0].mxu0
    %v215 = vadd.f32 0.0, %v214
    %v216 = vpop.f32.mrb[0].mxu0
    %v217 = vadd.f32 0.0, %v216
    %v218 = vpop.f32.mrb[0].mxu0
    %v219 = vadd.f32 0.0, %v218
    %v220 = vpop.f32.mrb[0].mxu0
    %v221 = vadd.f32 0.0, %v220
    %222 = vmatprep.mubr.bf16.mxu0 0
    %223 = vmatmul.mubr.bf16.gmra.mrb[0].mxu0 %v165
    %v224 = vpop.f32.mrb[0].mxu0
    %v225 = vadd.f32 0.0, %v224
    %v226 = vpop.f32.mrb[0].mxu0
    %v227 = vadd.f32 0.0, %v226
    %v228 = vpop.f32.mrb[0].mxu0
    %v229 = vadd.f32 0.0, %v228
    %v230 = vpop.f32.mrb[0].mxu0
    %v231 = vadd.f32 0.0, %v230
    %232 = vdwg.mxu0
    %233 = vmatprep.subr.bf16.mxu0 %v127
    %234 = vmatpush1.bf16.msra.mxu0 %v126
    %235 = vmatprep.subr.bf16.mxu0 %v131
    %236 = vmatpush1.bf16.msra.mxu0 %v130
    %237 = vmatprep.subr.bf16.mxu0 %v135
    %238 = vmatpush1.bf16.msra.mxu0 %v134
    %239 = vmatprep.subr.bf16.mxu0 %v139
    %240 = vmatpush1.bf16.msra.mxu0 %v138
    %241 = vmatprep.subr.bf16.mxu0 %v178
    %242 = vmatpush1.bf16.msra.mxu0 %v175
    %243 = vmatprep.subr.bf16.mxu0 0
    %244 = vmatpush1.bf16.msra.mxu0 0
    %245 = vmatprep.subr.bf16.mxu0 0
    %246 = vmatpush1.bf16.msra.mxu0 0
    %247 = vmatprep.subr.bf16.mxu0 0
    %248 = vmatpush1.bf16.msra.mxu0 0
    %249 = vmatprep.subr.bf16.mxu0 0
    %250 = vmatpush1.bf16.msra.mxu0 0
    %251 = vmatprep.subr.bf16.mxu0 0
    %252 = vmatpush1.bf16.msra.mxu0 0
    %253 = vmatprep.subr.bf16.mxu0 0
    %254 = vmatpush1.bf16.msra.mxu0 0
    %255 = vmatprep.subr.bf16.mxu0 0
    %256 = vmatpush1.bf16.msra.mxu0 0
    %257 = vmatprep.subr.bf16.mxu0 0
    %258 = vmatpush1.bf16.msra.mxu0 0
    %259 = vmatprep.subr.bf16.mxu0 0
    %260 = vmatpush1.bf16.msra.mxu0 0
    %261 = vmatprep.subr.bf16.mxu0 0
    %262 = vmatpush1.bf16.msra.mxu0 0
    %263 = vmatprep.subr.bf16.mxu0 0
    %264 = vmatpush1.bf16.msra.mxu0 0
    %265 = vmatprep.mubr.bf16.mxu0 0
    %266 = vmatmul.mubr.bf16.gmra.mrb[0].mxu0 %v162
    %v267 = vpop.f32.mrb[0].mxu0
    %v268 = vadd.f32 0.0, %v267
    %v269 = vpop.f32.mrb[0].mxu0
    %v270 = vadd.f32 0.0, %v269
    %v271 = vpop.f32.mrb[0].mxu0
    %v272 = vadd.f32 0.0, %v271
    %v273 = vpop.f32.mrb[0].mxu0
    %v274 = vadd.f32 0.0, %v273
    %275 = vmatprep.mubr.bf16.mxu0 0
    %276 = vmatmul.mubr.bf16.gmra.mrb[0].mxu0 %v165
    %v277 = vpop.f32.mrb[0].mxu0
    %v278 = vadd.f32 0.0, %v277
    %v279 = vpop.f32.mrb[0].mxu0
    %v280 = vadd.f32 0.0, %v279
    %v281 = vpop.f32.mrb[0].mxu0
    %v282 = vadd.f32 0.0, %v281
    %v283 = vpop.f32.mrb[0].mxu0
    %v284 = vadd.f32 0.0, %v283
    %285 = vdwg.mxu0
    %v286 = vld [vmem:[%s2] sm:$0xff]
    %v287 = vld [vmem:[%s2 + $0x8] sm:$0xff]
    %v288 = vld [vmem:[%s2 + $0x10] sm:$0xff]
    %v289 = vld [vmem:[%s2 + $0x18] sm:$0x3f]
    %291 = vset.pattern.permute.xlu0 0
    %292 = vperm.xlu0 %291, %v286
    %v293 = vpop.permute.xlu0 %292
    %296 = vset.pattern.permute.xlu0 0
    %297 = vperm.xlu0 %296, %v287
    %v298 = vpop.permute.xlu0 %297
    %301 = vset.pattern.permute.xlu0 0
    %302 = vperm.xlu0 %301, %v288
    %v303 = vpop.permute.xlu0 %302
    %306 = vset.pattern.permute.xlu0 0
    %307 = vperm.xlu0 %306, %v289
    %v308 = vpop.permute.xlu0 %307
    %v310 = vmax.f32 %v215, %v293
    %v311 = vmax.f32 %v217, %v293
    %v312 = vmax.f32 %v268, %v293
    %v313 = vmax.f32 %v270, %v293
    %v314 = vmax.f32 %v219, %v298
    %v315 = vmax.f32 %v221, %v298
    %v316 = vmax.f32 %v272, %v298
    %v317 = vmax.f32 %v274, %v298
    %v318 = vmax.f32 %v225, %v303
    %v319 = vmax.f32 %v227, %v303
    %v320 = vmax.f32 %v278, %v303
    %v321 = vmax.f32 %v280, %v303
    %v322 = vmax.f32 %v229, %v308
    %v323 = vmax.f32 %v231, %v308
    %v324 = vmax.f32 %v282, %v308
    %v325 = vmax.f32 %v284, %v308
    %326 = vset.pattern.permute.xlu0 1
    %327 = vperm.xlu0 %326, %v286
    %v328 = vpop.permute.xlu0 %327
    %330 = vset.pattern.permute.xlu0 1
    %331 = vperm.xlu0 %330, %v287
    %v332 = vpop.permute.xlu0 %331
    %334 = vset.pattern.permute.xlu0 1
    %335 = vperm.xlu0 %334, %v288
    %v336 = vpop.permute.xlu0 %335
    %338 = vset.pattern.permute.xlu0 1
    %339 = vperm.xlu0 %338, %v289
    %v340 = vpop.permute.xlu0 %339
    %v342 = vmin.f32 %v310, %v328
    %v343 = vmin.f32 %v311, %v328
    %v344 = vmin.f32 %v312, %v328
    %v345 = vmin.f32 %v313, %v328
    %v346 = vmin.f32 %v314, %v332
    %v347 = vmin.f32 %v315, %v332
    %v348 = vmin.f32 %v316, %v332
    %v349 = vmin.f32 %v317, %v332
    %v350 = vmin.f32 %v318, %v336
    %v351 = vmin.f32 %v319, %v336
    %v352 = vmin.f32 %v320, %v336
    %v353 = vmin.f32 %v321, %v336
    %v354 = vmin.f32 %v322, %v340
    %v355 = vmin.f32 %v323, %v340
    %v356 = vmin.f32 %v324, %v340
    %v357 = vmin.f32 %v325, %v340
    %358 = vst [vmem:[#allocation5] sm:$0xff] %v342
    %359 = vst [vmem:[#allocation5 + $0x8] sm:$0xff] %v343
    %360 = vst [vmem:[#allocation5 + $0x10] sm:$0xff] %v344
    %361 = vst [vmem:[#allocation5 + $0x18] sm:$0xff] %v345
    %362 = vst [vmem:[#allocation5 + $0x20] sm:$0xff] %v346
    %363 = vst [vmem:[#allocation5 + $0x28] sm:$0xff] %v347
    %364 = vst [vmem:[#allocation5 + $0x30] sm:$0xff] %v348
    %365 = vst [vmem:[#allocation5 + $0x38] sm:$0xff] %v349
    %366 = vst [vmem:[#allocation5 + $0x40] sm:$0xff] %v350
    %367 = vst [vmem:[#allocation5 + $0x48] sm:$0xff] %v351
    %368 = vst [vmem:[#allocation5 + $0x50] sm:$0xff] %v352
    %369 = vst [vmem:[#allocation5 + $0x58] sm:$0xff] %v353
    %370 = vst [vmem:[#allocation5 + $0x60] sm:$0x3f] %v354
    %371 = vst [vmem:[#allocation5 + $0x68] sm:$0x3f] %v355
    %372 = vst [vmem:[#allocation5 + $0x70] sm:$0x3f] %v356
    %373 = vst [vmem:[#allocation5 + $0x78] sm:$0x3f] %v357
    // Predicated region
    $region18: #{tpu_custom_call.1} parent=1 // pred_check
      _
    $region19: #{tpu_custom_call.1} parent=1 // pred_check_branch
      %375 = sbr.rel (0) target = $region21
    $region20: #{tpu_custom_call.1} parent=1 // pred_region
      %s377 = ssub.s32 2048, 2048
      %378 = vsyncadd [#allocation4], %s377
      %s379 = sshll.u32 [#allocation5], 4
      %s380 = int_to_ptr.vmem [resolvable:$true] %s379
      %385 = dma.vmem_to_hbm [thread:$0]  %s380, 2048, %s3, [#allocation4], 512, 512, 32
    $region21: #{tpu_custom_call.1} parent=1 // pred_fallthru
      _
    // Predicated region
    $region22: #{tpu_custom_call.1} parent=1 // pred_check
      _
    $region23: #{tpu_custom_call.1} parent=1 // pred_check_branch
      %387 = sbr.rel (0) target = $region25
    $region24: #{tpu_custom_call.1} parent=1 // pred_region
      %388 = dma.done [#allocation4], 2048
    $region25: #{tpu_custom_call.1} parent=1 // pred_fallthru
      _
    %389 = vsyncpa [#allocation3], 1
    %390 = vsyncpa [#allocation4], 1

</llo_original>
